<compile_context>
chip_gen: v5e
topology: v5e:2x2
jax: 0.10.0
libtpu: 0.0.40
codegen_flags: <defaults>
</compile_context>

<pallas_src>
import math

import jax
import jax.numpy as jnp
from jax.experimental import pallas as pl
from jax.experimental.pallas import tpu as pltpu


def _self_attention_kernel(x_ref, w_ref, b_ref, o_ref):
    # x_ref: (Bt, S, D) block; w_ref: (D, 3D) bf16 fused QKV weight (1/sqrt(D)
    # pre-folded into the Q columns); b_ref: (1, 3D) f32 fused bias.
    Bt, S, D = x_ref.shape

    # Fold batch into M: (Bt*S, D) rows through a single fused QKV projection.
    x2d = x_ref[...].astype(jnp.bfloat16).reshape(Bt * S, D)
    qkv = jnp.dot(x2d, w_ref[...], preferred_element_type=jnp.float32) + b_ref[...]
    qkv = qkv.reshape(Bt, S, 3 * D)

    q = qkv[..., :D]            # scale already folded into Wq / bq
    k = qkv[..., D:2 * D]
    v = qkv[..., 2 * D:]

    # Scaled dot-product scores, batched over Bt; contract over D (no transpose).
    s = jnp.einsum("bqd,bkd->bqk",
                   q.astype(jnp.bfloat16), k.astype(jnp.bfloat16),
                   preferred_element_type=jnp.float32)

    # Softmax in f32; approx reciprocal goes to the EUP slot.
    m = jnp.max(s, axis=-1, keepdims=True)
    p = jnp.exp(s - m)
    denom = jnp.sum(p, axis=-1, keepdims=True)
    attn = p * pl.reciprocal(denom, approx=True)

    o = jnp.einsum("bqk,bkd->bqd",
                   attn.astype(jnp.bfloat16), v.astype(jnp.bfloat16),
                   preferred_element_type=jnp.float32)
    o_ref[...] = o.astype(o_ref.dtype)


def prepare_qkv_params(wq, bq, wk, bk, wv, bv, *, weight_dtype=jnp.bfloat16):
    """One-time (init-style) param prep: fold 1/sqrt(D) into Wq/bq, fuse the
    three projections into a single (D, 3D) weight / (1, 3D) bias, and cast
    the weight to bf16 so the per-call path does no extra HBM traffic."""
    D = wq.shape[0]
    scale = 1.0 / math.sqrt(D)
    w_fused = jnp.concatenate([wq * scale, wk, wv], axis=1).astype(weight_dtype)
    b_fused = jnp.concatenate([bq * scale, bk, bv]).reshape(1, 3 * D).astype(jnp.float32)
    return w_fused, b_fused


def self_attention(x, w_fused, b_fused, *, batch_tile=None):
    """x: (B, S, D) f32; w_fused: (D, 3D) bf16; b_fused: (1, 3D) f32 -> (B, S, D) f32."""
    B, S, D = x.shape
    Bt = B if batch_tile is None else min(batch_tile, B)
    assert B % Bt == 0, (B, Bt)
    assert w_fused.shape == (D, 3 * D) and b_fused.shape == (1, 3 * D)

    x_spec = pl.BlockSpec((Bt, S, D), lambda i: (i, 0, 0))
    w_spec = pl.BlockSpec((D, 3 * D), lambda i: (0, 0))   # constant -> DMA'd once
    b_spec = pl.BlockSpec((1, 3 * D), lambda i: (0, 0))

    return pl.pallas_call(
        _self_attention_kernel,
        out_shape=jax.ShapeDtypeStruct((B, S, D), jnp.float32),
        grid_spec=pltpu.PrefetchScalarGridSpec(
            num_scalar_prefetch=0,
            grid=(B // Bt,),                   # single step at these shapes
            in_specs=[x_spec, w_spec, b_spec],
            out_specs=x_spec,
        ),
        compiler_params=pltpu.CompilerParams(
            # Batch folded into M -> one grid step; "arbitrary" avoids
            # duplicating the weight DMA per TensorCore on v7x when the
            # problem is latency-bound.
            dimension_semantics=("arbitrary",),
        ),
    )(x, w_fused, b_fused)


def self_attention_ref(x, wq, bq, wk, bk, wv, bv):
    """Pure f32 JAX reference matching the PyTorch module exactly."""
    D = x.shape[-1]
    q = jnp.einsum("bsd,de->bse", x, wq) + bq
    k = jnp.einsum("bsd,de->bse", x, wk) + bk
    v = jnp.einsum("bsd,de->bse", x, wv) + bv
    s = jnp.einsum("bqd,bkd->bqk", q, k) / math.sqrt(D)
    attn = jax.nn.softmax(s, axis=-1)
    return jnp.einsum("bqk,bkd->bqd", attn, v)


if __name__ == "__main__":
    # Small shapes consistent with the module: batch=2, seq=8, hidden=128
    # (hidden chosen lane-dense; Bt*S = 16 fills a full bf16 sublane tile).
    B, S, D = 2, 8, 128

    key = jax.random.PRNGKey(0)
    kx, kq, kk, kv, kbq, kbk, kbv = jax.random.split(key, 7)
    bound = 1.0 / math.sqrt(D)   # PyTorch-default-style uniform init

    x = jax.random.normal(kx, (B, S, D), jnp.float32)
    wq = jax.random.uniform(kq, (D, D), jnp.float32, -bound, bound)
    wk = jax.random.uniform(kk, (D, D), jnp.float32, -bound, bound)
    wv = jax.random.uniform(kv, (D, D), jnp.float32, -bound, bound)
    bq = jax.random.uniform(kbq, (D,), jnp.float32, -bound, bound)
    bk = jax.random.uniform(kbk, (D,), jnp.float32, -bound, bound)
    bv = jax.random.uniform(kbv, (D,), jnp.float32, -bound, bound)

    # Init-time prep (fold scale, fuse QKV, cast to bf16) -- not per-call.
    w_fused, b_fused = prepare_qkv_params(wq, bq, wk, bk, wv, bv)

    out = jax.block_until_ready(self_attention(x, w_fused, b_fused))
    ref = self_attention_ref(x, wq, bq, wk, bk, wv, bv)

    assert out.shape == (B, S, D), out.shape
    assert bool(jnp.all(jnp.isfinite(out)))
    max_err = float(jnp.max(jnp.abs(out - ref)))
    # Kernel runs q/k/v/attn through bf16 operands (f32 accumulation); the
    # reference is pure f32, so allow bf16-level rounding at D=128.
    assert max_err < 5e-2, f"max abs err vs f32 reference: {max_err}"
    print("KERNEL_OK")
</pallas_src>

<mosaic_0001>
module attributes {stable_mosaic.version = 11 : i64} {
  func.func @_self_attention_kernel(%arg0: i32, %arg1: memref<2x8x128xf32, #tpu.memory_space<vmem>>, %arg2: memref<128x384xbf16, #tpu.memory_space<vmem>>, %arg3: memref<1x384xf32, #tpu.memory_space<vmem>>, %arg4: memref<2x8x128xf32, #tpu.memory_space<vmem>>) attributes {dimension_semantics = [#tpu.dimension_semantics<arbitrary>], iteration_bounds = array<i64: 1>, scalar_prefetch = 0 : i64, scratch_operands = 0 : i64, tpu.core_type = #tpu.core_type<tc>, window_params = [{transform_indices = @transform_0, window_bounds = array<i64: 2, 8, 128>}, {pipeline_mode = #tpu.pipeline_mode<synchronous>, transform_indices = @transform_1, window_bounds = array<i64: 128, 384>}, {pipeline_mode = #tpu.pipeline_mode<synchronous>, transform_indices = @transform_2, window_bounds = array<i64: 1, 384>}, {transform_indices = @transform_3, window_bounds = array<i64: 2, 8, 128>}]} {
    %c0 = arith.constant 0 : index
    %c0_0 = arith.constant 0 : index
    %c0_1 = arith.constant 0 : index
    %0 = vector.load %arg1[%c0, %c0_0, %c0_1] : memref<2x8x128xf32, #tpu.memory_space<vmem>>, vector<2x8x128xf32>
    %1 = arith.truncf %0 : vector<2x8x128xf32> to vector<2x8x128xbf16>
    %2 = vector.shape_cast %1 : vector<2x8x128xbf16> to vector<16x128xbf16>
    %c0_2 = arith.constant 0 : index
    %c0_3 = arith.constant 0 : index
    %3 = vector.load %arg2[%c0_2, %c0_3] : memref<128x384xbf16, #tpu.memory_space<vmem>>, vector<128x384xbf16>
    %cst = arith.constant dense<0.000000e+00> : vector<16x384xf32>
    %4 = tpu.matmul %2, %3, %cst {dimension_numbers = #tpu.dot_dimension_numbers<[1], [0], [0], [1], [0, 0, 1, 1], [], []>} : vector<16x128xbf16>, vector<128x384xbf16>, vector<16x384xf32> -> vector<16x384xf32>
    %c0_4 = arith.constant 0 : index
    %c0_5 = arith.constant 0 : index
    %5 = vector.load %arg3[%c0_4, %c0_5] : memref<1x384xf32, #tpu.memory_space<vmem>>, vector<1x384xf32>
    %6 = vector.broadcast %5 : vector<1x384xf32> to vector<16x384xf32>
    %7 = arith.addf %4, %6 : vector<16x384xf32>
    %8 = vector.shape_cast %7 : vector<16x384xf32> to vector<2x8x384xf32>
    %9 = vector.extract_strided_slice %8 {offsets = [0, 0, 0], sizes = [2, 8, 128], strides = [1, 1, 1]} : vector<2x8x384xf32> to vector<2x8x128xf32>
    %10 = vector.extract_strided_slice %8 {offsets = [0, 0, 128], sizes = [2, 8, 128], strides = [1, 1, 1]} : vector<2x8x384xf32> to vector<2x8x128xf32>
    %11 = vector.extract_strided_slice %8 {offsets = [0, 0, 256], sizes = [2, 8, 128], strides = [1, 1, 1]} : vector<2x8x384xf32> to vector<2x8x128xf32>
    %12 = arith.truncf %9 : vector<2x8x128xf32> to vector<2x8x128xbf16>
    %13 = arith.truncf %10 : vector<2x8x128xf32> to vector<2x8x128xbf16>
    "tpu.trace_start"() <{level = 10 : i32, message = "bqd,bkd->bqk"}> : () -> ()
    %cst_6 = arith.constant dense<0.000000e+00> : vector<2x8x8xf32>
    %14 = tpu.matmul %12, %13, %cst_6 {dimension_numbers = #tpu.dot_dimension_numbers<[2], [2], [1], [1], [0, 0, 0, 1, 1, 1], [0], [0]>} : vector<2x8x128xbf16>, vector<2x8x128xbf16>, vector<2x8x8xf32> -> vector<2x8x8xf32>
    "tpu.trace_stop"() : () -> ()
    %cst_7 = arith.constant dense<0xFF800000> : vector<2x8xf32>
    %15 = vector.multi_reduction <maximumf>, %14, %cst_7 [2] : vector<2x8x8xf32> to vector<2x8xf32>
    %16 = vector.shape_cast %15 : vector<2x8xf32> to vector<2x8x1xf32>
    %17 = vector.broadcast %16 : vector<2x8x1xf32> to vector<2x8x8xf32>
    %18 = arith.subf %14, %17 : vector<2x8x8xf32>
    %19 = math.exp %18 : vector<2x8x8xf32>
    %cst_8 = arith.constant dense<0.000000e+00> : vector<2x8xf32>
    %20 = vector.multi_reduction <add>, %19, %cst_8 [2] : vector<2x8x8xf32> to vector<2x8xf32>
    %21 = vector.shape_cast %20 : vector<2x8xf32> to vector<2x8x1xf32>
    %22 = tpu.reciprocal %21 {approx = true} : vector<2x8x1xf32> -> vector<2x8x1xf32>
    %23 = vector.broadcast %22 : vector<2x8x1xf32> to vector<2x8x8xf32>
    %24 = arith.mulf %19, %23 : vector<2x8x8xf32>
    %25 = arith.truncf %24 : vector<2x8x8xf32> to vector<2x8x8xbf16>
    %26 = arith.truncf %11 : vector<2x8x128xf32> to vector<2x8x128xbf16>
    "tpu.trace_start"() <{level = 10 : i32, message = "bqk,bkd->bqd"}> : () -> ()
    %cst_9 = arith.constant dense<0.000000e+00> : vector<2x8x128xf32>
    %27 = tpu.matmul %25, %26, %cst_9 {dimension_numbers = #tpu.dot_dimension_numbers<[2], [1], [1], [2], [0, 0, 0, 1, 1, 2], [0], [0]>} : vector<2x8x8xbf16>, vector<2x8x128xbf16>, vector<2x8x128xf32> -> vector<2x8x128xf32>
    "tpu.trace_stop"() : () -> ()
    %c0_10 = arith.constant 0 : index
    %c0_11 = arith.constant 0 : index
    %c0_12 = arith.constant 0 : index
    %28 = vector.load %arg4[%c0_10, %c0_11, %c0_12] : memref<2x8x128xf32, #tpu.memory_space<vmem>>, vector<2x8x128xf32>
    tpu.vector_store %arg4[%c0_10, %c0_11, %c0_12], %27 {strides = array<i32>} : memref<2x8x128xf32, #tpu.memory_space<vmem>>, vector<2x8x128xf32>,
    return
  }
  func.func @transform_0(%arg0: i32) -> (i32, i32, i32) {
    %c0_i32 = arith.constant 0 : i32
    %c0_i32_0 = arith.constant 0 : i32
    %c0_i32_1 = arith.constant 0 : i32
    return %arg0, %c0_i32, %c0_i32_0 : i32, i32, i32
  }
  func.func @transform_1(%arg0: i32) -> (i32, i32) {
    %c0_i32 = arith.constant 0 : i32
    %c0_i32_0 = arith.constant 0 : i32
    %c0_i32_1 = arith.constant 0 : i32
    return %c0_i32, %c0_i32_0 : i32, i32
  }
  func.func @transform_2(%arg0: i32) -> (i32, i32) {
    %c0_i32 = arith.constant 0 : i32
    %c0_i32_0 = arith.constant 0 : i32
    %c0_i32_1 = arith.constant 0 : i32
    return %c0_i32, %c0_i32_0 : i32, i32
  }
  func.func @transform_3(%arg0: i32) -> (i32, i32, i32) {
    %c0_i32 = arith.constant 0 : i32
    %c0_i32_0 = arith.constant 0 : i32
    %c0_i32_1 = arith.constant 0 : i32
    return %arg0, %c0_i32, %c0_i32_0 : i32, i32, i32
  }
}

</mosaic_0001>

<llo_original>
// kernel: tpu_custom_call.1
$region0: #{tpu_custom_call.1}
  #allocation0 [shape = 'u32[]', space=smem, size = 0x4, offset = 0x4, fixed_abs, tag = 'smem constant byte address 0x4 - core index']
  #allocation1 [shape = 'u32[72,128]{1,0:T(1,128)}', space=vmem, size = 0x9000, scoped, tag = 'internal scratch']
  %s0 = inlined_call_operand.hbm [shape: f32[2,8,128], index: 0, kind: input, shape index: {}]
  %s1 = inlined_call_operand.hbm [shape: bf16[128,384], index: 1, kind: input, shape index: {}]
  %s2 = inlined_call_operand.hbm [shape: f32[1,384], index: 2, kind: input, shape index: {}]
  %s3 = inlined_call_operand.hbm [shape: f32[2,8,128], index: 3, kind: output, shape index: {}]
  %s4 = sld [smem:[#allocation0]]
  $region34: #{tpu_custom_call.1} parent=0
    _
  %s6 = ssub.s32 1, %s4
  %s7 = scalar_select 0, %s6, %s4
  $region1: #{tpu_custom_call.1} parent=0
    #allocation2 [shape = 'u8[8192]{0}', space=vmem, size = 0x2000, scoped, tag = 'input window, operand 0, single buffered']
    #allocation3 [shape = 's32[1]{0}', space=sflag, size = 0x4, scoped, tag = 'scoped memory for tpu_custom_call.1']
    #allocation4 [shape = 's32[1]{0}', space=sflag, size = 0x4, scoped, tag = 'scoped memory for tpu_custom_call.1']
    #allocation5 [shape = 'u8[98304]{0}', space=vmem, size = 0x18000, scoped, tag = 'input window, operand 1, single buffered']
    #allocation6 [shape = 's32[1]{0}', space=sflag, size = 0x4, scoped, tag = 'scoped memory for tpu_custom_call.1']
    #allocation7 [shape = 'u8[1536]{0}', space=vmem, size = 0x800, scoped, tag = 'input window, operand 2, single buffered']
    #allocation8 [shape = 'u8[8192]{0}', space=vmem, size = 0x2000, scoped, tag = 'output window, operand 0, single buffered']
    %8 = vsyncpa [#allocation3], 0
    %9 = vsyncpa [#allocation6], 0
    %10 = vsyncpa [#allocation4], 0
    // Predicated region
    $region2: #{tpu_custom_call.1} parent=1 // pred_check
      _
    $region3: #{tpu_custom_call.1} parent=1 // pred_check_branch
      %12 = sbr.rel (0) target = $region5
    $region4: #{tpu_custom_call.1} parent=1 // pred_region
      %14 = vsyncadd [#allocation3], 0
      %s15 = sshll.u32 %s0, 4
      %s16 = int_to_ptr.hbm [resolvable:$true] %s15
      %s17 = sshll.u32 [#allocation2], 4
      %s18 = int_to_ptr.vmem [resolvable:$true] %s17
      %23 = dma.hbm_to_vmem [thread:$0]  %s16, 256, %s18, [#allocation3], 128, 128, 8
    $region5: #{tpu_custom_call.1} parent=1 // pred_fallthru
      _
    // Predicated region
    $region6: #{tpu_custom_call.1} parent=1 // pred_check
      _
    $region7: #{tpu_custom_call.1} parent=1 // pred_check_branch
      %25 = sbr.rel (0) target = $region9
    $region8: #{tpu_custom_call.1} parent=1 // pred_region
      %27 = vsyncadd [#allocation6], 0
      %s28 = sshll.u32 %s1, 4
      %s29 = int_to_ptr.hbm [resolvable:$true] %s28
      %s30 = sshll.u32 [#allocation5], 4
      %s31 = int_to_ptr.vmem [resolvable:$true] %s30
      %36 = dma.hbm_to_vmem [thread:$0]  %s29, 3072, %s31, [#allocation6], 192, 192, 12
    $region9: #{tpu_custom_call.1} parent=1 // pred_fallthru
      _
    // Predicated region
    $region10: #{tpu_custom_call.1} parent=1 // pred_check
      _
    $region11: #{tpu_custom_call.1} parent=1 // pred_check_branch
      %38 = sbr.rel (0) target = $region13
    $region12: #{tpu_custom_call.1} parent=1 // pred_region
      %40 = vsyncadd [#allocation6], 0
      %s42 = sshll.u32 %s2, 4
      %s43 = int_to_ptr.hbm [resolvable:$true] %s42
      %s44 = sshll.u32 [#allocation7], 4
      %s45 = int_to_ptr.vmem [resolvable:$true] %s44
      %47 = dma.hbm_to_vmem [thread:$0]  %s43, 48, %s45, [#allocation6]
    $region13: #{tpu_custom_call.1} parent=1 // pred_fallthru
      _
    // Predicated region
    $region14: #{tpu_custom_call.1} parent=1 // pred_check
      _
    $region15: #{tpu_custom_call.1} parent=1 // pred_check_branch
      %49 = sbr.rel (0) target = $region17
    $region16: #{tpu_custom_call.1} parent=1 // pred_region
      %51 = dma.done [#allocation3], 256
    $region17: #{tpu_custom_call.1} parent=1 // pred_fallthru
      _
    // Predicated region
    $region18: #{tpu_custom_call.1} parent=1 // pred_check
      _
    $region19: #{tpu_custom_call.1} parent=1 // pred_check_branch
      %53 = sbr.rel (0) target = $region21
    $region20: #{tpu_custom_call.1} parent=1 // pred_region
      %55 = dma.done [#allocation6], 3072
    $region21: #{tpu_custom_call.1} parent=1 // pred_fallthru
      _
    // Predicated region
    $region22: #{tpu_custom_call.1} parent=1 // pred_check
      _
    $region23: #{tpu_custom_call.1} parent=1 // pred_check_branch
      %57 = sbr.rel (0) target = $region25
    $region24: #{tpu_custom_call.1} parent=1 // pred_region
      %59 = dma.done [#allocation6], 48
    $region25: #{tpu_custom_call.1} parent=1 // pred_fallthru
      _
    %v61 = vld [vmem:[#allocation2] sm:$0xff]
    %v62 = vld [vmem:[#allocation2 + $0x8] sm:$0xff]
    %v63 = vpack.c.bf16 %v61, %v61
    %v64 = vpack.c.bf16 %v62, %v62
    %v65 = vld [vmem:[#allocation5] sm:$0xff]
    %v66 = vld [vmem:[#allocation5 + $0x8] sm:$0xf]
    %v67 = vld [vmem:[#allocation5 + $0xc] sm:$0xff]
    %v68 = vld [vmem:[#allocation5 + $0x14] sm:$0xf]
    %v69 = vld [vmem:[#allocation5 + $0x18] sm:$0xff]
    %v70 = vld [vmem:[#allocation5 + $0x20] sm:$0xf]
    %v71 = vld [vmem:[#allocation5 + $0x24] sm:$0xff]
    %v72 = vld [vmem:[#allocation5 + $0x2c] sm:$0xf]
    %v73 = vld [vmem:[#allocation5 + $0x30] sm:$0xff]
    %v74 = vld [vmem:[#allocation5 + $0x38] sm:$0xf]
    %v75 = vld [vmem:[#allocation5 + $0x3c] sm:$0xff]
    %v76 = vld [vmem:[#allocation5 + $0x44] sm:$0xf]
    %v77 = vld [vmem:[#allocation5 + $0x48] sm:$0xff]
    %v78 = vld [vmem:[#allocation5 + $0x50] sm:$0xf]
    %v79 = vld [vmem:[#allocation5 + $0x54] sm:$0xff]
    %v80 = vld [vmem:[#allocation5 + $0x5c] sm:$0xf]
    %v81 = vld [vmem:[#allocation5 + $0x60] sm:$0xff]
    %v82 = vld [vmem:[#allocation5 + $0x68] sm:$0xf]
    %v83 = vld [vmem:[#allocation5 + $0x6c] sm:$0xff]
    %v84 = vld [vmem:[#allocation5 + $0x74] sm:$0xf]
    %v85 = vld [vmem:[#allocation5 + $0x78] sm:$0xff]
    %v86 = vld [vmem:[#allocation5 + $0x80] sm:$0xf]
    %v87 = vld [vmem:[#allocation5 + $0x84] sm:$0xff]
    %v88 = vld [vmem:[#allocation5 + $0x8c] sm:$0xf]
    %v89 = vld [vmem:[#allocation5 + $0x90] sm:$0xff]
    %v90 = vld [vmem:[#allocation5 + $0x98] sm:$0xf]
    %v91 = vld [vmem:[#allocation5 + $0x9c] sm:$0xff]
    %v92 = vld [vmem:[#allocation5 + $0xa4] sm:$0xf]
    %v93 = vld [vmem:[#allocation5 + $0xa8] sm:$0xff]
    %v94 = vld [vmem:[#allocation5 + $0xb0] sm:$0xf]
    %v95 = vld [vmem:[#allocation5 + $0xb4] sm:$0xff]
    %v96 = vld [vmem:[#allocation5 + $0xbc] sm:$0xf]
    %v97 = vld [vmem:[#allocation7] sm:$0x7]
    %v99 = vperm.slane %v97, 0
    %v100 = vperm.slane %v97, 1
    %v101 = vperm.slane %v97, 2
    %v107 = vunpack.c.l.b16 %v63
    %v108 = vunpack.c.l.b16 %v64
    %v109 = vpack.c.b16 %v108, %v107
    %v143 = vunpack.c.l.b16 %v65
    %v144 = vunpack.c.h.b16 %v65
    %v145 = vunpack.c.l.b16 %v66
    %v146 = vunpack.c.l.b16 %v67
    %v147 = vunpack.c.h.b16 %v67
    %v148 = vunpack.c.l.b16 %v68
    %v149 = vunpack.c.l.b16 %v69
    %v150 = vunpack.c.h.b16 %v69
    %v151 = vunpack.c.l.b16 %v70
    %v152 = vunpack.c.l.b16 %v71
    %v153 = vunpack.c.h.b16 %v71
    %v154 = vunpack.c.l.b16 %v72
    %v155 = vunpack.c.l.b16 %v73
    %v156 = vunpack.c.h.b16 %v73
    %v157 = vunpack.c.l.b16 %v74
    %v158 = vunpack.c.l.b16 %v75
    %v159 = vunpack.c.h.b16 %v75
    %v160 = vunpack.c.l.b16 %v76
    %v161 = vunpack.c.l.b16 %v77
    %v162 = vunpack.c.h.b16 %v77
    %v163 = vunpack.c.l.b16 %v78
    %v164 = vunpack.c.l.b16 %v79
    %v165 = vunpack.c.h.b16 %v79
    %v166 = vunpack.c.l.b16 %v80
    %v167 = vunpack.c.l.b16 %v81
    %v168 = vunpack.c.h.b16 %v81
    %v169 = vunpack.c.l.b16 %v82
    %v170 = vunpack.c.l.b16 %v83
    %v171 = vunpack.c.h.b16 %v83
    %v172 = vunpack.c.l.b16 %v84
    %v173 = vunpack.c.l.b16 %v85
    %v174 = vunpack.c.h.b16 %v85
    %v175 = vunpack.c.l.b16 %v86
    %v176 = vunpack.c.l.b16 %v87
    %v177 = vunpack.c.h.b16 %v87
    %v178 = vunpack.c.l.b16 %v88
    %v179 = vunpack.c.l.b16 %v89
    %v180 = vunpack.c.h.b16 %v89
    %v181 = vunpack.c.l.b16 %v90
    %v182 = vunpack.c.l.b16 %v91
    %v183 = vunpack.c.h.b16 %v91
    %v184 = vunpack.c.l.b16 %v92
    %v185 = vunpack.c.l.b16 %v93
    %v186 = vunpack.c.h.b16 %v93
    %v187 = vunpack.c.l.b16 %v94
    %v188 = vunpack.c.l.b16 %v95
    %v189 = vunpack.c.h.b16 %v95
    %v190 = vunpack.c.l.b16 %v96
    %v191 = vpack.c.b16 %v146, %v143
    %v192 = vpack.c.b16 %v147, %v144
    %v193 = vpack.c.b16 %v148, %v145
    %v194 = vpack.c.b16 %v152, %v149
    %v195 = vpack.c.b16 %v153, %v150
    %v196 = vpack.c.b16 %v154, %v151
    %v197 = vpack.c.b16 %v158, %v155
    %v198 = vpack.c.b16 %v159, %v156
    %v199 = vpack.c.b16 %v160, %v157
    %v200 = vpack.c.b16 %v164, %v161
    %v201 = vpack.c.b16 %v165, %v162
    %v202 = vpack.c.b16 %v166, %v163
    %v203 = vpack.c.b16 %v170, %v167
    %v204 = vpack.c.b16 %v171, %v168
    %v205 = vpack.c.b16 %v172, %v169
    %v206 = vpack.c.b16 %v176, %v173
    %v207 = vpack.c.b16 %v177, %v174
    %v208 = vpack.c.b16 %v178, %v175
    %v209 = vpack.c.b16 %v182, %v179
    %v210 = vpack.c.b16 %v183, %v180
    %v211 = vpack.c.b16 %v184, %v181
    %v212 = vpack.c.b16 %v188, %v185
    %v213 = vpack.c.b16 %v189, %v186
    %v214 = vpack.c.b16 %v190, %v187
    %239 = vmatpush.bf16.msra.mxu0 %v212
    %240 = vmatpush.bf16.msra.mxu0 %v209
    %241 = vmatpush.bf16.msra.mxu0 %v206
    %242 = vmatpush.bf16.msra.mxu0 %v203
    %243 = vmatpush.bf16.msra.mxu0 %v200
    %244 = vmatpush.bf16.msra.mxu0 %v197
    %245 = vmatpush.bf16.msra.mxu0 %v194
    %246 = vmatpush.bf16.msra.mxu0 %v191
    %247 = vmatmul.bf16.gmra.mxu0 %v109
    %v248 = vpop.f32.mrf.mxu0
    %v249 = vadd.f32 %v99, %v248
    %v250 = vpop.f32.mrf.mxu0
    %v251 = vadd.f32 %v99, %v250
    %252 = vdwg.mxu0
    %253 = vmatpush.bf16.msra.mxu0 %v213
    %254 = vmatpush.bf16.msra.mxu0 %v210
    %255 = vmatpush.bf16.msra.mxu0 %v207
    %256 = vmatpush.bf16.msra.mxu0 %v204
    %257 = vmatpush.bf16.msra.mxu0 %v201
    %258 = vmatpush.bf16.msra.mxu0 %v198
    %259 = vmatpush.bf16.msra.mxu0 %v195
    %260 = vmatpush.bf16.msra.mxu0 %v192
    %261 = vmatmul.bf16.gmra.mxu0 %v109
    %v262 = vpop.f32.mrf.mxu0
    %v263 = vadd.f32 %v100, %v262
    %v264 = vpop.f32.mrf.mxu0
    %v265 = vadd.f32 %v100, %v264
    %266 = vdwg.mxu0
    %267 = vmatpush.bf16.msra.mxu0 %v214
    %268 = vmatpush.bf16.msra.mxu0 %v211
    %269 = vmatpush.bf16.msra.mxu0 %v208
    %270 = vmatpush.bf16.msra.mxu0 %v205
    %271 = vmatpush.bf16.msra.mxu0 %v202
    %272 = vmatpush.bf16.msra.mxu0 %v199
    %273 = vmatpush.bf16.msra.mxu0 %v196
    %274 = vmatpush.bf16.msra.mxu0 %v193
    %275 = vmatmul.bf16.gmra.mxu0 %v109
    %v276 = vpop.f32.mrf.mxu0
    %v277 = vadd.f32 %v101, %v276
    %v278 = vpop.f32.mrf.mxu0
    %v279 = vadd.f32 %v101, %v278
    %280 = vdwg.mxu0
    %v281 = vpack.c.bf16 %v249, %v249
    %v282 = vpack.c.bf16 %v251, %v251
    %v283 = vpack.c.bf16 %v263, %v263
    %v284 = vpack.c.bf16 %v265, %v265
    %285 = vmatpush.bf16.xpose.msra.mxu0 0
    %286 = vmatpush.bf16.xpose.msra.mxu0 0
    %287 = vmatpush.bf16.xpose.msra.mxu0 0
    %288 = vmatpush.bf16.xpose.msra.mxu0 0
    %289 = vmatpush.bf16.xpose.msra.mxu0 0
    %290 = vmatpush.bf16.xpose.msra.mxu0 0
    %291 = vmatpush.bf16.xpose.msra.mxu0 0
    %292 = vmatpush.bf16.xpose.msra.mxu0 %v283
    %293 = vmatmul.bf16.gmra.mxu0 %v281
    %v294 = vpop.f32.mrf.mxu0
    %v295 = vadd.f32 0.0, %v294
    %v296 = vpop.f32.mrf.mxu0
    %297 = vdwg.mxu0
    %298 = vmatpush.bf16.xpose.msra.mxu0 0
    %299 = vmatpush.bf16.xpose.msra.mxu0 0
    %300 = vmatpush.bf16.xpose.msra.mxu0 0
    %301 = vmatpush.bf16.xpose.msra.mxu0 0
    %302 = vmatpush.bf16.xpose.msra.mxu0 0
    %303 = vmatpush.bf16.xpose.msra.mxu0 0
    %304 = vmatpush.bf16.xpose.msra.mxu0 0
    %305 = vmatpush.bf16.xpose.msra.mxu0 %v284
    %306 = vmatmul.bf16.gmra.mxu0 %v282
    %v307 = vpop.f32.mrf.mxu0
    %v308 = vadd.f32 0.0, %v307
    %v309 = vpop.f32.mrf.mxu0
    %310 = vdwg.mxu0
    %vm311 = vcmask 64512
    %v312 = vsel %vm311, %v295, -inf
    %313 = vmax.xlane.f32.xlu0 %v312
    %v314 = vpop.xlane.xlu0 %313
    %v315 = vsel %vm311, %v308, -inf
    %316 = vmax.xlane.f32.xlu0 %v315
    %v317 = vpop.xlane.xlu0 %316
    %v318 = vsub.f32 %v295, %v314
    %v319 = vsub.f32 %v308, %v317
    %v320 = vmul.f32 %v318, 1.442695
    %v321 = vpow.pop %v320
    %v322 = vmul.f32 %v319, 1.442695
    %v323 = vpow.pop %v322
    %v324 = vsel %vm311, %v321, 0.0
    %325 = vadd.xlane.f32.xlu0 %v324
    %v326 = vpop.xlane.xlu0 %325
    %v327 = vsel %vm311, %v323, 0.0
    %328 = vadd.xlane.f32.xlu0 %v327
    %v329 = vpop.xlane.xlu0 %328
    %v330 = vrcp.pop %v326
    %v331 = vrcp.pop %v329
    %v332 = vmul.f32 %v321, %v330
    %v333 = vmul.f32 %v323, %v331
    %v334 = vpack.c.bf16 %v332, %v332
    %v335 = vpack.c.bf16 %v333, %v333
    %v336 = vpack.c.bf16 %v277, %v277
    %v337 = vpack.c.bf16 %v279, %v279
    %v339 = vsel %vm311, %v334, 0
    %vm341 = vcmask 1043456
    %v343 = vsel %vm341, %v336, 0
    %345 = vmatpush.bf16.msra.mxu0 0
    %346 = vmatpush.bf16.msra.mxu0 0
    %347 = vmatpush.bf16.msra.mxu0 0
    %348 = vmatpush.bf16.msra.mxu0 0
    %349 = vmatpush.bf16.msra.mxu0 0
    %350 = vmatpush.bf16.msra.mxu0 0
    %351 = vmatpush.bf16.msra.mxu0 0
    %352 = vmatpush.bf16.msra.mxu0 %v343
    %353 = vmatmul.bf16.gmra.mxu0 %v339
    %v354 = vpop.f32.mrf.mxu0
    %v355 = vadd.f32 0.0, %v354
    %v356 = vpop.f32.mrf.mxu0
    %357 = vdwg.mxu0
    %v359 = vsel %vm311, %v335, 0
    %v362 = vsel %vm341, %v337, 0
    %364 = vmatpush.bf16.msra.mxu0 0
    %365 = vmatpush.bf16.msra.mxu0 0
    %366 = vmatpush.bf16.msra.mxu0 0
    %367 = vmatpush.bf16.msra.mxu0 0
    %368 = vmatpush.bf16.msra.mxu0 0
    %369 = vmatpush.bf16.msra.mxu0 0
    %370 = vmatpush.bf16.msra.mxu0 0
    %371 = vmatpush.bf16.msra.mxu0 %v362
    %372 = vmatmul.bf16.gmra.mxu0 %v359
    %v373 = vpop.f32.mrf.mxu0
    %v374 = vadd.f32 0.0, %v373
    %v375 = vpop.f32.mrf.mxu0
    %376 = vdwg.mxu0
    %377 = vst [vmem:[#allocation8] sm:$0xff] %v355
    %378 = vst [vmem:[#allocation8 + $0x8] sm:$0xff] %v374
    // Predicated region
    $region26: #{tpu_custom_call.1} parent=1 // pred_check
      _
    $region27: #{tpu_custom_call.1} parent=1 // pred_check_branch
      %380 = sbr.rel (0) target = $region29
    $region28: #{tpu_custom_call.1} parent=1 // pred_region
      %382 = vsyncadd [#allocation4], 0
      %s383 = sshll.u32 [#allocation8], 4
      %s384 = int_to_ptr.vmem [resolvable:$true] %s383
      %s385 = sshll.u32 %s3, 4
      %s386 = int_to_ptr.hbm [resolvable:$true] %s385
      %391 = dma.vmem_to_hbm [thread:$0]  %s384, 256, %s386, [#allocation4], 128, 128, 8
    $region29: #{tpu_custom_call.1} parent=1 // pred_fallthru
      _
    // Predicated region
    $region30: #{tpu_custom_call.1} parent=1 // pred_check
      _
    $region31: #{tpu_custom_call.1} parent=1 // pred_check_branch
      %393 = sbr.rel (0) target = $region33
    $region32: #{tpu_custom_call.1} parent=1 // pred_region
      %395 = dma.done [#allocation4], 256
    $region33: #{tpu_custom_call.1} parent=1 // pred_fallthru
      _
    %396 = vsyncpa [#allocation3], 1
    %397 = vsyncpa [#allocation6], 1
    %398 = vsyncpa [#allocation4], 1

</llo_original>
